<compile_context>
chip_gen: v7x
topology: tpu7x:2x2x1
jax: 0.10.0
libtpu: 0.0.40
codegen_flags: <defaults>
</compile_context>

<pallas_src>
import functools

import jax
import jax.numpy as jnp
from jax.experimental import pallas as pl
from jax.experimental.pallas import tpu as pltpu


def _linear_kernel(x_ref, w_ref, b_ref, o_ref):
    # Single MXU matmul + bias add; everything already sits in VMEM.
    x = x_ref[...]                      # (Bt, K)
    w = w_ref[...]                      # (K, N_pad)
    b = b_ref[...]                      # (1, N_pad)
    y = jnp.dot(x, w, preferred_element_type=jnp.float32) + b
    o_ref[...] = y.astype(o_ref.dtype)


def _round_up(v, m):
    return (v + m - 1) // m * m


@functools.partial(jax.jit, static_argnames=("batch_tile",))
def linear_forward(x, weight, bias, *, batch_tile=512):
    """y = x @ weight.T + bias  (== torch.nn.Linear(10, num_classes).forward).

    weight: (num_classes, in_features) as stored by torch; bias: (num_classes,).
    """
    B, K = x.shape
    N = weight.shape[0]

    # Lane-dense output: pad num_classes up to a multiple of 128 so the kernel
    # stores full vregs (unmasked vst) instead of 2-lane masked partial stores.
    N_pad = _round_up(N, 128)
    w_t = jnp.zeros((K, N_pad), jnp.float32).at[:, :N].set(
        weight.T.astype(jnp.float32))
    b_p = jnp.zeros((1, N_pad), jnp.float32).at[:, :N].set(
        bias.astype(jnp.float32))
    x_f = x.astype(jnp.float32)

    if B <= batch_tile:
        # Single-block problem: no grid, no pipeline prologue/epilogue.
        out = pl.pallas_call(
            _linear_kernel,
            out_shape=jax.ShapeDtypeStruct((B, N_pad), jnp.float32),
            in_specs=[
                pl.BlockSpec(memory_space=pltpu.MemorySpace.VMEM),
                pl.BlockSpec(memory_space=pltpu.MemorySpace.VMEM),
                pl.BlockSpec(memory_space=pltpu.MemorySpace.VMEM),
            ],
            out_specs=pl.BlockSpec(memory_space=pltpu.MemorySpace.VMEM),
        )(x_f, w_t, b_p)
        return out[:, :N]

    # Batched path: large blocks over batch, weight/bias resident across steps.
    B_pad = _round_up(B, batch_tile)
    if B_pad != B:
        x_f = jnp.zeros((B_pad, K), jnp.float32).at[:B].set(x_f)

    out = pl.pallas_call(
        _linear_kernel,
        out_shape=jax.ShapeDtypeStruct((B_pad, N_pad), jnp.float32),
        grid=(B_pad // batch_tile,),
        in_specs=[
            pl.BlockSpec((batch_tile, K), lambda i: (i, 0)),
            pl.BlockSpec((K, N_pad), lambda i: (0, 0)),   # DMA'd once, stays resident
            pl.BlockSpec((1, N_pad), lambda i: (0, 0)),   # DMA'd once, stays resident
        ],
        out_specs=pl.BlockSpec((batch_tile, N_pad), lambda i: (i, 0)),
        compiler_params=pltpu.CompilerParams(
            dimension_semantics=("parallel",),            # shard batch across TCs (v7x)
        ),
    )(x_f, w_t, b_p)
    return out[:B, :N]


if __name__ == "__main__":
    num_classes = 2
    in_features = 10
    batch = 8

    key = jax.random.PRNGKey(0)
    kx, kw, kb, kx2 = jax.random.split(key, 4)

    # Deterministic parameter init (mimics nn.Linear uniform init bounds).
    bound = 1.0 / (in_features ** 0.5)
    w = jax.random.uniform(kw, (num_classes, in_features),
                           minval=-bound, maxval=bound, dtype=jnp.float32)
    b = jax.random.uniform(kb, (num_classes,),
                           minval=-bound, maxval=bound, dtype=jnp.float32)

    # Small-batch path (no grid).
    x = jax.random.normal(kx, (batch, in_features), dtype=jnp.float32)
    y = linear_forward(x, w, b)
    jax.block_until_ready(y)
    y_ref = x @ w.T + b
    assert y.shape == (batch, num_classes)
    assert jnp.allclose(y, y_ref, atol=1e-5, rtol=1e-5), "small-batch mismatch"

    # Batch-tiled path (grid over batch, resident weights, parallel axis).
    big_batch = 1024
    x2 = jax.random.normal(kx2, (big_batch, in_features), dtype=jnp.float32)
    y2 = linear_forward(x2, w, b, batch_tile=256)
    jax.block_until_ready(y2)
    y2_ref = x2 @ w.T + b
    assert y2.shape == (big_batch, num_classes)
    assert jnp.allclose(y2, y2_ref, atol=1e-5, rtol=1e-5), "tiled mismatch"

    print("KERNEL_OK")
</pallas_src>

<mosaic_0001>
module attributes {stable_mosaic.version = 11 : i64} {
  func.func @_linear_kernel(%arg0: memref<8x10xf32, #tpu.memory_space<vmem>>, %arg1: memref<10x128xf32, #tpu.memory_space<vmem>>, %arg2: memref<1x128xf32, #tpu.memory_space<vmem>>, %arg3: memref<8x128xf32, #tpu.memory_space<vmem>>) attributes {dimension_semantics = [], scalar_prefetch = 0 : i64, scratch_operands = 0 : i64, tpu.core_type = #tpu.core_type<tc>} {
    %c0 = arith.constant 0 : index
    %c0_0 = arith.constant 0 : index
    %0 = vector.load %arg0[%c0, %c0_0] : memref<8x10xf32, #tpu.memory_space<vmem>>, vector<8x10xf32>
    %c0_1 = arith.constant 0 : index
    %c0_2 = arith.constant 0 : index
    %1 = vector.load %arg1[%c0_1, %c0_2] : memref<10x128xf32, #tpu.memory_space<vmem>>, vector<10x128xf32>
    %c0_3 = arith.constant 0 : index
    %c0_4 = arith.constant 0 : index
    %2 = vector.load %arg2[%c0_3, %c0_4] : memref<1x128xf32, #tpu.memory_space<vmem>>, vector<1x128xf32>
    %cst = arith.constant dense<0.000000e+00> : vector<8x128xf32>
    %3 = tpu.matmul %0, %1, %cst {dimension_numbers = #tpu.dot_dimension_numbers<[1], [0], [0], [1], [0, 0, 1, 1], [], []>} : vector<8x10xf32>, vector<10x128xf32>, vector<8x128xf32> -> vector<8x128xf32>
    %4 = vector.broadcast %2 : vector<1x128xf32> to vector<8x128xf32>
    %5 = arith.addf %3, %4 : vector<8x128xf32>
    %c0_5 = arith.constant 0 : index
    %c0_6 = arith.constant 0 : index
    %6 = vector.load %arg3[%c0_5, %c0_6] : memref<8x128xf32, #tpu.memory_space<vmem>>, vector<8x128xf32>
    tpu.vector_store %arg3[%c0_5, %c0_6], %5 {strides = array<i32>} : memref<8x128xf32, #tpu.memory_space<vmem>>, vector<8x128xf32>,
    return
  }
}

</mosaic_0001>

<llo_original>
// kernel: linear_forward.1
$region0: #{linear_forward.1}
  #allocation0 [shape = 'u32[]', space=smem, size = 0x4, offset = 0x4, fixed_abs, tag = 'smem constant byte address 0x4 - core index']
  #allocation1 [shape = 'u32[144,128]{1,0:T(1,128)}', space=vmem, size = 0x12000, scoped, tag = 'internal scratch']
  %s0 = inlined_call_operand.vmem [shape: f32[8,10], index: 0, kind: input, shape index: {}]
  %s1 = inlined_call_operand.vmem [shape: f32[10,128], index: 1, kind: input, shape index: {}]
  %s2 = inlined_call_operand.vmem [shape: f32[1,128], index: 2, kind: input, shape index: {}]
  %s3 = inlined_call_operand.vmem [shape: f32[8,128], index: 3, kind: output, shape index: {}]
  %s4 = sld [smem:[#allocation0]]
  $region22: #{linear_forward.1} parent=0
    _
  %s6 = ssub.s32 1, %s4
  %s7 = scalar_select 0, %s6, %s4
  // Predicated region
  $region2: #{linear_forward.1} parent=0 // pred_check
    _
  $region3: #{linear_forward.1} parent=0 // pred_check_branch
    %9 = sbr.rel (0) target = $region5
  $region4: #{linear_forward.1} parent=0 // pred_region
    _
  $region5: #{linear_forward.1} parent=0 // pred_fallthru
    _
  // Predicated region
  $region6: #{linear_forward.1} parent=0 // pred_check
    _
  $region7: #{linear_forward.1} parent=0 // pred_check_branch
    %11 = sbr.rel (0) target = $region9
  $region8: #{linear_forward.1} parent=0 // pred_region
    _
  $region9: #{linear_forward.1} parent=0 // pred_fallthru
    _
  // Predicated region
  $region10: #{linear_forward.1} parent=0 // pred_check
    _
  $region11: #{linear_forward.1} parent=0 // pred_check_branch
    %13 = sbr.rel (0) target = $region13
  $region12: #{linear_forward.1} parent=0 // pred_region
    _
  $region13: #{linear_forward.1} parent=0 // pred_fallthru
    _
  %v14 = vld [vmem:[%s0] sm:$0xff]
  %v15 = vld [vmem:[%s1] sm:$0xff]
  %v16 = vld [vmem:[%s1 + $0x8] sm:$0x3]
  %v17 = vld [vmem:[%s2] sm:$0x1]
  %v19 = vlaneseq
  %v20 = vshrl.u32 %v19, 7
  %v21 = vsub.s32 0, %v20
  %v22 = vrot.slane %v17, %v21
  %vm24 = vcmask 80896
  %v26 = vsel %vm24, %v14, 0
  %vm28 = vcmask 1041408
  %v30 = vsel %vm28, %v16, 0
  %32 = vmatprep.subr.mxu0 0.0
  %33 = vmatpush1.msra.mxu0 %v15
  %34 = vmatprep.subr.mxu0 0.0
  %35 = vmatpush1.msra.mxu0 %v30
  %36 = vmatprep.subr.mxu0 0.0
  %37 = vmatpush1.msra.mxu0 0.0
  %38 = vmatprep.subr.mxu0 0.0
  %39 = vmatpush1.msra.mxu0 0.0
  %40 = vmatprep.subr.mxu0 0.0
  %41 = vmatpush1.msra.mxu0 0.0
  %42 = vmatprep.subr.mxu0 0.0
  %43 = vmatpush1.msra.mxu0 0.0
  %44 = vmatprep.subr.mxu0 0.0
  %45 = vmatpush1.msra.mxu0 0.0
  %46 = vmatprep.subr.mxu0 0.0
  %47 = vmatpush1.msra.mxu0 0.0
  %48 = vmatprep.subr.mxu0 0.0
  %49 = vmatpush1.msra.mxu0 0.0
  %50 = vmatprep.subr.mxu0 0.0
  %51 = vmatpush1.msra.mxu0 0.0
  %52 = vmatprep.subr.mxu0 0.0
  %53 = vmatpush1.msra.mxu0 0.0
  %54 = vmatprep.subr.mxu0 0.0
  %55 = vmatpush1.msra.mxu0 0.0
  %56 = vmatprep.subr.mxu0 0.0
  %57 = vmatpush1.msra.mxu0 0.0
  %58 = vmatprep.subr.mxu0 0.0
  %59 = vmatpush1.msra.mxu0 0.0
  %60 = vmatprep.subr.mxu0 0.0
  %61 = vmatpush1.msra.mxu0 0.0
  %62 = vmatprep.subr.mxu0 0.0
  %63 = vmatpush1.msra.mxu0 0.0
  %64 = vmatprep.subr.mxu0 0.0
  %65 = vmatpush1.msra.mxu0 0.0
  %66 = vmatprep.subr.mxu0 0.0
  %67 = vmatpush1.msra.mxu0 0.0
  %68 = vmatprep.subr.mxu0 0.0
  %69 = vmatpush1.msra.mxu0 0.0
  %70 = vmatprep.subr.mxu0 0.0
  %71 = vmatpush1.msra.mxu0 0.0
  %72 = vmatprep.subr.mxu0 0.0
  %73 = vmatpush1.msra.mxu0 0.0
  %74 = vmatprep.subr.mxu0 0.0
  %75 = vmatpush1.msra.mxu0 0.0
  %76 = vmatprep.subr.mxu0 0.0
  %77 = vmatpush1.msra.mxu0 0.0
  %78 = vmatprep.subr.mxu0 0.0
  %79 = vmatpush1.msra.mxu0 0.0
  %80 = vmatprep.subr.mxu0 0.0
  %81 = vmatpush1.msra.mxu0 0.0
  %82 = vmatprep.subr.mxu0 0.0
  %83 = vmatpush1.msra.mxu0 0.0
  %84 = vmatprep.subr.mxu0 0.0
  %85 = vmatpush1.msra.mxu0 0.0
  %86 = vmatprep.subr.mxu0 0.0
  %87 = vmatpush1.msra.mxu0 0.0
  %88 = vmatprep.subr.mxu0 0.0
  %89 = vmatpush1.msra.mxu0 0.0
  %90 = vmatprep.subr.mxu0 0.0
  %91 = vmatpush1.msra.mxu0 0.0
  %92 = vmatprep.subr.mxu0 0.0
  %93 = vmatpush1.msra.mxu0 0.0
  %94 = vmatprep.subr.mxu0 0.0
  %95 = vmatpush1.msra.mxu0 0.0
  %96 = vmatprep.mubr.f32.mxu0 0.0
  %97 = vmatmul.mubr.f32.gmra.mrb[0].mxu0 %v26
  %v98 = vpop.f32.mrb[0].mxu0
  %v99 = vadd.f32 %v22, %v98
  %v100 = vpop.f32.mrb[0].mxu0
  %101 = vdwg.mxu0
  %102 = vst [vmem:[%s3] sm:$0xff] %v99
  // Predicated region
  $region14: #{linear_forward.1} parent=0 // pred_check
    _
  $region15: #{linear_forward.1} parent=0 // pred_check_branch
    %104 = sbr.rel (0) target = $region17
  $region16: #{linear_forward.1} parent=0 // pred_region
    _
  $region17: #{linear_forward.1} parent=0 // pred_fallthru
    _
  // Predicated region
  $region18: #{linear_forward.1} parent=0 // pred_check
    _
  $region19: #{linear_forward.1} parent=0 // pred_check_branch
    %106 = sbr.rel (0) target = $region21
  $region20: #{linear_forward.1} parent=0 // pred_region
    _
  $region21: #{linear_forward.1} parent=0 // pred_fallthru
    _

</llo_original>
